<compile_context>
chip_gen: v5e
topology: v5e:2x2
jax: 0.10.0
libtpu: 0.0.40
codegen_flags: <defaults>
</compile_context>

<pallas_src>
from typing import NamedTuple, Optional

import jax
import jax.numpy as jnp
from jax.experimental import pallas as pl
from jax.experimental.pallas import tpu as pltpu


class InterFeatState(NamedTuple):
    y: jax.Array
    alpha: jax.Array


_LANE = 128
# Conservative pipeline budget that fits v7x's 64 MiB physical VMEM with
# double-buffered tiles.  TODO(synk): raise the budget on v5e/v6e (128 MiB
# physical) via a generation query for even larger activation tiles.
_VMEM_BUDGET_BYTES = 36 * 1024 * 1024


def _round_up(n: int, m: int) -> int:
    return ((n + m - 1) // m) * m


def _row_multiple(dtype) -> int:
    # Sublane packing granularity for the second-to-last dim.
    itemsize = jnp.dtype(dtype).itemsize
    return {4: 8, 2: 16, 1: 32}.get(itemsize, 8)


def _vmem_limit(pipeline_bytes: int) -> int:
    return min(max(int(pipeline_bytes * 1.5) + (2 << 20), 8 << 20), 64 << 20)


# ----------------------------- Pallas kernels ------------------------------ #

def _featnorm_rows_kernel(x_ref, rot_t_ref, bias_ref, o_ref):
    # y = x @ rot.T - (mean @ rot.T).  rot.T and the bias are precomputed in
    # the wrapper, so this is a single plain (M,K)x(K,N) MXU matmul with the
    # bias subtract fused into the output cast/store.
    acc = jnp.dot(x_ref[...], rot_t_ref[...], preferred_element_type=jnp.float32)
    o_ref[...] = (acc - bias_ref[...]).astype(o_ref.dtype)


def _featnorm_nchw_kernel(x_ref, rot_ref, bias_ref, o_ref):
    # Channel-major 1x1 conv: y = rot @ x - (rot @ mean).
    # x_ref: (1, C, TP), rot_ref: (C, C), bias_ref: (C, 1), o_ref: (1, C, TP).
    acc = jnp.dot(rot_ref[...], x_ref[0], preferred_element_type=jnp.float32)
    o_ref[0] = (acc - bias_ref[...]).astype(o_ref.dtype)


# ------------------------------ Pallas callers ------------------------------ #

def _call_pipeline(kernel, *, out_shape, grid, make_in_specs, out_spec,
                   compiler_params, cost_estimate, operands):
    """Invoke pallas_call, preferring single-buffered grid-invariant operands.

    Falls back to default double buffering if this Pallas version rejects
    pipeline_mode=pl.Buffered(1).
    """
    last_err = None
    for single_buffer_consts in (True, False):
        try:
            fn = pl.pallas_call(
                kernel,
                out_shape=out_shape,
                grid_spec=pltpu.PrefetchScalarGridSpec(
                    num_scalar_prefetch=0,
                    grid=grid,
                    in_specs=make_in_specs(single_buffer_consts),
                    out_specs=out_spec,
                ),
                compiler_params=compiler_params,
                cost_estimate=cost_estimate,
            )
            return fn(*operands)
        except Exception as err:  # version-dependent fallback
            last_err = err
    raise last_err


def _run_kernel_rows(x2d: jax.Array, mean: jax.Array, rot: jax.Array,
                     *, max_tile_m: int = 512) -> jax.Array:
    """(x2d - mean) @ rot.T over rows.  x2d: (N, D), mean: (D,), rot: (D, D)."""
    N, D = x2d.shape
    itemsize = jnp.dtype(x2d.dtype).itemsize
    row_mult = _row_multiple(x2d.dtype)

    def pipeline_bytes(tm: int) -> int:
        # double-buffered x tile + double-buffered out tile
        # + rotation (assume double-buffered; Buffered(1) may fall back) + bias.
        return itemsize * (4 * tm * D + 2 * D * D) + 4 * D

    if N > row_mult:
        # Aim for >= 2 grid steps so both v7x TensorCores get work.
        tile_m = min(max_tile_m, _round_up(pl.cdiv(N, 2), row_mult))
    else:
        tile_m = _round_up(N, row_mult)
    tile_m = max(tile_m, row_mult)
    while tile_m > row_mult and pipeline_bytes(tile_m) > _VMEM_BUDGET_BYTES:
        tile_m = max(row_mult, _round_up(tile_m // 2, row_mult))

    grid_m = pl.cdiv(N, tile_m)

    rot_t = rot.T                                            # one-time XLA transpose
    bias = (rot @ mean).astype(jnp.float32).reshape(1, D)    # == mean @ rot.T

    def make_in_specs(single_buffer_consts: bool):
        ck = dict(pipeline_mode=pl.Buffered(1)) if single_buffer_consts else {}
        return [
            pl.BlockSpec((tile_m, D), lambda i: (i, 0)),          # x row tile
            pl.BlockSpec((D, D), lambda i: (0, 0), **ck),          # rot.T (resident)
            pl.BlockSpec((1, D), lambda i: (0, 0), **ck),          # bias (resident)
        ]

    cost = pl.CostEstimate(
        flops=2 * N * D * D,
        transcendentals=0,
        bytes_accessed=itemsize * (2 * N * D + D * D) + 4 * D,
    )

    return _call_pipeline(
        _featnorm_rows_kernel,
        out_shape=jax.ShapeDtypeStruct((N, D), x2d.dtype),
        grid=(grid_m,),
        make_in_specs=make_in_specs,
        out_spec=pl.BlockSpec((tile_m, D), lambda i: (i, 0)),
        compiler_params=pltpu.CompilerParams(
            dimension_semantics=("parallel",),
            vmem_limit_bytes=_vmem_limit(pipeline_bytes(tile_m))),
        cost_estimate=cost,
        operands=(x2d, rot_t, bias),
    )


def _run_kernel_nchw(x: jax.Array, mean: jax.Array, rot: jax.Array,
                     *, max_tile_p: int = 1024) -> jax.Array:
    """NCHW 1x1 conv path.  x: (B, C, H, W)."""
    B, C, H, W = x.shape
    HW = H * W

    if HW < _LANE:
        # Small spatial extents: the channel-major kernel would run at <50%
        # lane occupancy with masked stores; a one-time NCHW<->NHWC transpose
        # plus the lane-dense rows matmul is cheaper.
        xr = jnp.transpose(x, (0, 2, 3, 1)).reshape(B * HW, C)
        y = _run_kernel_rows(xr, mean, rot)
        return jnp.transpose(y.reshape(B, H, W, C), (0, 3, 1, 2))

    itemsize = jnp.dtype(x.dtype).itemsize

    def pipeline_bytes(tp: int) -> int:
        return itemsize * (4 * C * tp + 2 * C * C) + 4 * C

    if HW % _LANE == 0:
        tile_p = min(max_tile_p, HW)
    else:
        tile_p = min(max_tile_p, max(_LANE, (HW // _LANE) * _LANE))
    if B == 1 and HW > _LANE:
        # Ensure the parallel pixel axis has >= 2 steps for v7x's 2 cores.
        tile_p = min(tile_p, max(_LANE, _round_up(pl.cdiv(HW, 2), _LANE)))
    while tile_p > _LANE and pipeline_bytes(tile_p) > _VMEM_BUDGET_BYTES:
        tile_p = max(_LANE, _round_up(tile_p // 2, _LANE))

    grid = (B, pl.cdiv(HW, tile_p))

    bias = (rot @ mean).astype(jnp.float32).reshape(C, 1)
    x3 = x.reshape(B, C, HW)                          # contiguous, no data movement

    def make_in_specs(single_buffer_consts: bool):
        ck = dict(pipeline_mode=pl.Buffered(1)) if single_buffer_consts else {}
        return [
            pl.BlockSpec((1, C, tile_p), lambda b, p: (b, 0, p)),  # pixel tile
            pl.BlockSpec((C, C), lambda b, p: (0, 0), **ck),        # rot (resident)
            pl.BlockSpec((C, 1), lambda b, p: (0, 0), **ck),        # bias (resident)
        ]

    cost = pl.CostEstimate(
        flops=2 * B * HW * C * C,
        transcendentals=0,
        bytes_accessed=itemsize * (2 * B * C * HW + C * C) + 4 * C,
    )

    out = _call_pipeline(
        _featnorm_nchw_kernel,
        out_shape=jax.ShapeDtypeStruct((B, C, HW), x.dtype),
        grid=grid,
        make_in_specs=make_in_specs,
        out_spec=pl.BlockSpec((1, C, tile_p), lambda b, p: (b, 0, p)),
        compiler_params=pltpu.CompilerParams(
            dimension_semantics=("parallel", "parallel"),
            vmem_limit_bytes=_vmem_limit(pipeline_bytes(tile_p))),
        cost_estimate=cost,
        operands=(x3, rot, bias),
    )
    return out.reshape(B, C, H, W)


def _run_kernel(x: jax.Array, mean: jax.Array, rot: jax.Array) -> jax.Array:
    """Mirrors the torch `_run_kernel`: 2D/3D matmul, 4D NCHW 1x1 conv."""
    if x.ndim <= 3:
        lead = x.shape[:-1]
        D = x.shape[-1]
        y = _run_kernel_rows(x.reshape(-1, D), mean, rot)
        return y.reshape(*lead, D)
    elif x.ndim == 4:
        return _run_kernel_nchw(x, mean, rot)
    else:
        raise ValueError(f"Unsupported input dimension: {x.ndim}, shape: {x.shape}")


# --------------------------- Module equivalent ----------------------------- #

class IntermediateFeatureNormalizer:
    def __init__(self, num_intermediates: int, embed_dim: int,
                 rot_per_layer: bool = False, dtype=jnp.float32,
                 key: Optional[jax.Array] = None):
        # Same parameter shapes as the torch __init__.  If a PRNG key is given
        # the parameters are perturbed so the kernel does non-trivial work.
        # TODO(synk): for embed_dim not a multiple of 128, zero-padding the
        # rotation/means/output channels to the next 128 multiple at
        # construction time would give unmasked (lane-dense) stores; kept
        # unpadded to preserve exact parameter shapes.
        # TODO(synk): optionally cast the rotation/activations to bf16 before
        # the dot on v6e/v7x when the accuracy budget allows.
        if key is None:
            self.alphas = jnp.ones((num_intermediates,), dtype=dtype)
            self.means = jnp.zeros((num_intermediates, embed_dim), dtype=dtype)
            rot = jnp.eye(embed_dim, dtype=dtype)
            if rot_per_layer:
                rot = jnp.tile(rot[None], (num_intermediates, 1, 1))
        else:
            k1, k2, k3 = jax.random.split(key, 3)
            self.alphas = jax.random.uniform(k1, (num_intermediates,),
                                             dtype=dtype, minval=0.5, maxval=1.5)
            self.means = 0.1 * jax.random.normal(
                k3, (num_intermediates, embed_dim), dtype=dtype)
            if rot_per_layer:
                rot = (jnp.eye(embed_dim, dtype=dtype)[None]
                       + 0.05 * jax.random.normal(
                           k2, (num_intermediates, embed_dim, embed_dim), dtype=dtype))
            else:
                rot = (jnp.eye(embed_dim, dtype=dtype)
                       + 0.05 * jax.random.normal(
                           k2, (embed_dim, embed_dim), dtype=dtype))
        self.rotation = rot

    def _get_rotation(self, rot_index: int) -> jax.Array:
        if self.rotation.ndim == 2:
            return self.rotation
        return self.rotation[rot_index]

    def __call__(self, x: jax.Array, index: int, rot_index: int = None,
                 skip: Optional[int] = None) -> InterFeatState:
        if rot_index is None:
            rot_index = index
        prefix = None
        if skip:
            assert x.ndim == 3, (
                "Cannot use the `skip` parameter when the `x` tensor isn't 3-dimensional.")
            # TODO(synk): avoid the slice/concat HBM round trips by offsetting
            # the output index_map by `skip` and aliasing the input buffer.
            prefix, x = x[:, :skip], x[:, skip:]

        rotation = self._get_rotation(rot_index)
        y = _run_kernel(x, self.means[index], rotation)
        alpha = self.alphas[index]

        if skip:
            alpha = jnp.concatenate(
                [jnp.ones((skip,), dtype=alpha.dtype),
                 jnp.broadcast_to(alpha.reshape(1), (y.shape[1],))]
            ).reshape(1, -1, 1)
            y = jnp.concatenate([prefix, y], axis=1)
        elif x.ndim == 3:
            alpha = jnp.broadcast_to(alpha.reshape(1, 1, 1), (1, y.shape[1], 1))
        elif x.ndim == 4:
            alpha = jnp.broadcast_to(alpha.reshape(1, 1, 1, 1),
                                     (1, 1, y.shape[2], y.shape[3]))
        else:
            raise ValueError(f"Unsupported input dimension: {x.ndim}")
        return InterFeatState(y, alpha)


# ------------------------------- Reference --------------------------------- #

def _ref_forward(norm: IntermediateFeatureNormalizer, x, index, rot_index=None,
                 skip=None):
    """Pure-jnp reference mirroring the torch forward (y only)."""
    if rot_index is None:
        rot_index = index
    prefix = None
    if skip:
        prefix, x = x[:, :skip], x[:, skip:]
    rot = norm._get_rotation(rot_index)
    mean = norm.means[index]
    if x.ndim <= 3:
        y = (x - mean) @ rot.T
    else:
        y = jnp.einsum("bchw,dc->bdhw", x - mean.reshape(1, -1, 1, 1), rot)
    if skip:
        y = jnp.concatenate([prefix, y], axis=1)
    return y


# --------------------------------- Main ------------------------------------ #

if __name__ == "__main__":
    key = jax.random.PRNGKey(0)
    k_params, k3, k4a, k4b, k4c = jax.random.split(key, 5)

    num_intermediates, embed_dim = 4, 32
    norm = IntermediateFeatureNormalizer(num_intermediates, embed_dim,
                                         rot_per_layer=True, key=k_params)
    tol = dict(atol=1e-4, rtol=1e-4)

    # 3D input [B, S, D] with skip tokens.
    B, S, D = 2, 10, embed_dim
    x3 = jax.random.normal(k3, (B, S, D), dtype=jnp.float32)
    st3 = norm(x3, index=1, skip=2)
    jax.block_until_ready(st3.y)
    assert st3.y.shape == (B, S, D) and st3.alpha.shape == (1, S, 1)
    assert jnp.allclose(st3.y, _ref_forward(norm, x3, index=1, skip=2), **tol)

    # 4D NCHW, H*W multiple of 128 -> channel-major kernel path.
    x4a = jax.random.normal(k4a, (B, embed_dim, 16, 16), dtype=jnp.float32)
    st4a = norm(x4a, index=2)
    jax.block_until_ready(st4a.y)
    assert st4a.y.shape == x4a.shape and st4a.alpha.shape == (1, 1, 16, 16)
    assert jnp.allclose(st4a.y, _ref_forward(norm, x4a, index=2), **tol)

    # 4D NCHW, H*W < 128 -> lane-dense rows fallback (one transpose each way).
    x4b = jax.random.normal(k4b, (B, embed_dim, 8, 8), dtype=jnp.float32)
    st4b = norm(x4b, index=0)
    jax.block_until_ready(st4b.y)
    assert st4b.y.shape == x4b.shape and st4b.alpha.shape == (1, 1, 8, 8)
    assert jnp.allclose(st4b.y, _ref_forward(norm, x4b, index=0), **tol)

    # 4D NCHW, H*W = 196 (not a multiple of 128) -> masked partial lane block.
    x4c = jax.random.normal(k4c, (B, embed_dim, 14, 14), dtype=jnp.float32)
    st4c = norm(x4c, index=3)
    jax.block_until_ready(st4c.y)
    assert st4c.y.shape == x4c.shape and st4c.alpha.shape == (1, 1, 14, 14)
    assert jnp.allclose(st4c.y, _ref_forward(norm, x4c, index=3), **tol)

    print("KERNEL_OK")
</pallas_src>

<mosaic_0001>
module attributes {stable_mosaic.version = 11 : i64} {
  func.func @_featnorm_rows_kernel(%arg0: i32, %arg1: memref<8x32xf32, #tpu.memory_space<vmem>>, %arg2: memref<32x32xf32, #tpu.memory_space<vmem>>, %arg3: memref<1x32xf32, #tpu.memory_space<vmem>>, %arg4: memref<8x32xf32, #tpu.memory_space<vmem>>) attributes {dimension_semantics = [#tpu.dimension_semantics<parallel>], iteration_bounds = array<i64: 2>, scalar_prefetch = 0 : i64, scratch_operands = 0 : i64, tpu.core_type = #tpu.core_type<tc>, window_params = [{transform_indices = @transform_0, window_bounds = array<i64: 8, 32>}, {pipeline_mode = #tpu.pipeline_mode<synchronous>, transform_indices = @transform_1, window_bounds = array<i64: 32, 32>}, {pipeline_mode = #tpu.pipeline_mode<synchronous>, transform_indices = @transform_2, window_bounds = array<i64: 1, 32>}, {transform_indices = @transform_3, window_bounds = array<i64: 8, 32>}]} {
    %c0 = arith.constant 0 : index
    %c0_0 = arith.constant 0 : index
    %0 = vector.load %arg1[%c0, %c0_0] : memref<8x32xf32, #tpu.memory_space<vmem>>, vector<8x32xf32>
    %c0_1 = arith.constant 0 : index
    %c0_2 = arith.constant 0 : index
    %1 = vector.load %arg2[%c0_1, %c0_2] : memref<32x32xf32, #tpu.memory_space<vmem>>, vector<32x32xf32>
    %cst = arith.constant dense<0.000000e+00> : vector<8x32xf32>
    %2 = tpu.matmul %0, %1, %cst {dimension_numbers = #tpu.dot_dimension_numbers<[1], [0], [0], [1], [0, 0, 1, 1], [], []>} : vector<8x32xf32>, vector<32x32xf32>, vector<8x32xf32> -> vector<8x32xf32>
    %c0_3 = arith.constant 0 : index
    %c0_4 = arith.constant 0 : index
    %3 = vector.load %arg3[%c0_3, %c0_4] : memref<1x32xf32, #tpu.memory_space<vmem>>, vector<1x32xf32>
    %4 = vector.broadcast %3 : vector<1x32xf32> to vector<8x32xf32>
    %5 = arith.subf %2, %4 : vector<8x32xf32>
    %c0_5 = arith.constant 0 : index
    %c0_6 = arith.constant 0 : index
    %6 = vector.load %arg4[%c0_5, %c0_6] : memref<8x32xf32, #tpu.memory_space<vmem>>, vector<8x32xf32>
    tpu.vector_store %arg4[%c0_5, %c0_6], %5 {strides = array<i32>} : memref<8x32xf32, #tpu.memory_space<vmem>>, vector<8x32xf32>,
    return
  }
  func.func @transform_0(%arg0: i32) -> (i32, i32) {
    %c0_i32 = arith.constant 0 : i32
    %c0_i32_0 = arith.constant 0 : i32
    return %arg0, %c0_i32 : i32, i32
  }
  func.func @transform_1(%arg0: i32) -> (i32, i32) {
    %c0_i32 = arith.constant 0 : i32
    %c0_i32_0 = arith.constant 0 : i32
    %c0_i32_1 = arith.constant 0 : i32
    return %c0_i32, %c0_i32_0 : i32, i32
  }
  func.func @transform_2(%arg0: i32) -> (i32, i32) {
    %c0_i32 = arith.constant 0 : i32
    %c0_i32_0 = arith.constant 0 : i32
    %c0_i32_1 = arith.constant 0 : i32
    return %c0_i32, %c0_i32_0 : i32, i32
  }
  func.func @transform_3(%arg0: i32) -> (i32, i32) {
    %c0_i32 = arith.constant 0 : i32
    %c0_i32_0 = arith.constant 0 : i32
    return %arg0, %c0_i32 : i32, i32
  }
}

module attributes {stable_mosaic.version = 11 : i64} {
  func.func @_featnorm_rows_kernel(%arg0: i32, %arg1: memref<8x32xf32, #tpu.memory_space<vmem>>, %arg2: memref<32x32xf32, #tpu.memory_space<vmem>>, %arg3: memref<1x32xf32, #tpu.memory_space<vmem>>, %arg4: memref<8x32xf32, #tpu.memory_space<vmem>>) attributes {dimension_semantics = [#tpu.dimension_semantics<parallel>], iteration_bounds = array<i64: 2>, scalar_prefetch = 0 : i64, scratch_operands = 0 : i64, tpu.core_type = #tpu.core_type<tc>, window_params = [{transform_indices = @transform_0, window_bounds = array<i64: 8, 32>}, {pipeline_mode = #tpu.pipeline_mode<synchronous>, transform_indices = @transform_1, window_bounds = array<i64: 32, 32>}, {pipeline_mode = #tpu.pipeline_mode<synchronous>, transform_indices = @transform_2, window_bounds = array<i64: 1, 32>}, {transform_indices = @transform_3, window_bounds = array<i64: 8, 32>}]} {
    %c0 = arith.constant 0 : index
    %c0_0 = arith.constant 0 : index
    %0 = vector.load %arg1[%c0, %c0_0] : memref<8x32xf32, #tpu.memory_space<vmem>>, vector<8x32xf32>
    %c0_1 = arith.constant 0 : index
    %c0_2 = arith.constant 0 : index
    %1 = vector.load %arg2[%c0_1, %c0_2] : memref<32x32xf32, #tpu.memory_space<vmem>>, vector<32x32xf32>
    %cst = arith.constant dense<0.000000e+00> : vector<8x32xf32>
    %2 = tpu.matmul %0, %1, %cst {dimension_numbers = #tpu.dot_dimension_numbers<[1], [0], [0], [1], [0, 0, 1, 1], [], []>} : vector<8x32xf32>, vector<32x32xf32>, vector<8x32xf32> -> vector<8x32xf32>
    %c0_3 = arith.constant 0 : index
    %c0_4 = arith.constant 0 : index
    %3 = vector.load %arg3[%c0_3, %c0_4] : memref<1x32xf32, #tpu.memory_space<vmem>>, vector<1x32xf32>
    %4 = vector.broadcast %3 : vector<1x32xf32> to vector<8x32xf32>
    %5 = arith.subf %2, %4 : vector<8x32xf32>
    %c0_5 = arith.constant 0 : index
    %c0_6 = arith.constant 0 : index
    %6 = vector.load %arg4[%c0_5, %c0_6] : memref<8x32xf32, #tpu.memory_space<vmem>>, vector<8x32xf32>
    tpu.vector_store %arg4[%c0_5, %c0_6], %5 {strides = array<i32>} : memref<8x32xf32, #tpu.memory_space<vmem>>, vector<8x32xf32>,
    return
  }
  func.func @transform_0(%arg0: i32) -> (i32, i32) {
    %c0_i32 = arith.constant 0 : i32
    %c0_i32_0 = arith.constant 0 : i32
    return %arg0, %c0_i32 : i32, i32
  }
  func.func @transform_1(%arg0: i32) -> (i32, i32) {
    %c0_i32 = arith.constant 0 : i32
    %c0_i32_0 = arith.constant 0 : i32
    %c0_i32_1 = arith.constant 0 : i32
    return %c0_i32, %c0_i32_0 : i32, i32
  }
  func.func @transform_2(%arg0: i32) -> (i32, i32) {
    %c0_i32 = arith.constant 0 : i32
    %c0_i32_0 = arith.constant 0 : i32
    %c0_i32_1 = arith.constant 0 : i32
    return %c0_i32, %c0_i32_0 : i32, i32
  }
  func.func @transform_3(%arg0: i32) -> (i32, i32) {
    %c0_i32 = arith.constant 0 : i32
    %c0_i32_0 = arith.constant 0 : i32
    return %arg0, %c0_i32 : i32, i32
  }
}

</mosaic_0001>

<llo_original>
// kernel: tpu_custom_call.1
$region0: #{tpu_custom_call.1}
  #allocation0 [shape = 'u32[]', space=smem, size = 0x4, offset = 0x4, fixed_abs, tag = 'smem constant byte address 0x4 - core index']
  #allocation1 [shape = 'u32[72,128]{1,0:T(1,128)}', space=vmem, size = 0x9000, scoped, tag = 'internal scratch']
  %s0 = inlined_call_operand.hbm [shape: f32[16,32], index: 0, kind: input, shape index: {}]
  %s1 = inlined_call_operand.hbm [shape: f32[32,32], index: 1, kind: input, shape index: {}]
  %s2 = inlined_call_operand.vmem [shape: f32[1,32], index: 2, kind: input, shape index: {}]
  %s3 = inlined_call_operand.hbm [shape: f32[16,32], index: 3, kind: output, shape index: {}]
  %s4 = sld [smem:[#allocation0]]
  $region53: #{tpu_custom_call.1} parent=0
    _
  %s6 = ssub.s32 1, %s4
  %s7 = scalar_select 0, %s6, %s4
  $region1: #{tpu_custom_call.1} parent=0
    #allocation2 [shape = 'u8[8192]{0}', space=vmem, size = 0x2000, scoped, tag = 'input window, operand 0']
    #allocation3 [shape = 's32[2]{0}', space=sflag, size = 0x8, scoped, tag = 'scoped memory for tpu_custom_call.1']
    #allocation4 [shape = 's32[2]{0}', space=sflag, size = 0x8, scoped, tag = 'scoped memory for tpu_custom_call.1']
    #allocation5 [shape = 'u8[16384]{0}', space=vmem, size = 0x4000, scoped, tag = 'input window, operand 1, single buffered']
    #allocation6 [shape = 's32[1]{0}', space=sflag, size = 0x4, scoped, tag = 'scoped memory for tpu_custom_call.1']
    #allocation7 [shape = 'u8[8192]{0}', space=vmem, size = 0x2000, scoped, tag = 'output window, operand 0']
    %8 = vsyncpa [#allocation3], 0
    %s9 = scalar_lea.sflag [#allocation3], 1
    %10 = vsyncpa %s9, 0
    %11 = vsyncpa [#allocation6], 0
    %12 = vsyncpa [#allocation4], 0
    %s13 = scalar_lea.sflag [#allocation4], 1
    %14 = vsyncpa %s13, 0
    loop: start=0, step=1, limit=4
    $region2: #{tpu_custom_call.1} parent=1 // loop_pre_header
      _
    $region3: #{tpu_custom_call.1} parent=1 // loop_header
      %s16 = sphi 0, %s20
      %p17 = scmp.ge.s32.totalorder %s16, 4
      %s26 = sphi 0, %s28
      %s29 = sphi 0, %s26
      %s30 = sphi 0, %s29
      %s46 = sphi 0, %s30
      %s50 = sphi 0, %s50
      %s52 = sphi 0, %s50
      %s53 = sphi 0, %s52
      %s67 = sphi 0, %s53
      %s71 = sphi 0, %s71
      %s73 = sphi 0, %s71
      %s74 = sphi 0, %s73
      %s88 = sphi 0, %s74
      %s94 = sphi 0, %s96
      %s97 = sphi 0, %s94
      %s98 = sphi 0, %s97
      %s114 = sphi 0, %s98
    $region4: #{tpu_custom_call.1} parent=1 // loop_header_branch
      %19 = sbr.rel (%p17) target = $region8
    $region5: #{tpu_custom_call.1} parent=1 // loop_body
      %s21 = ssub.s32 %s16, 1
      %s22 = ssub.s32 %s16, 2
      %s23 = sadd.s32 %s16, 1
      %s24 = ssub.s32 %s16, %s23
      %p25 = scmp.eq.s32.totalorder %s24, 0
      %s27 = sadd.s32 %s26, 1
      %s28 = scalar_select %p25, %s26, %s27
      %p31 = pneg %p25
      %p32 = scmp.eq.s32.totalorder %s16, 1
      %p33 = por %p31, %p32
      %p34 = scmp.ne.s32.totalorder %s26, %s29
      %p35 = scmp.eq.s32.totalorder %s16, 0
      %p36 = por %p34, %p35
      %p37 = scmp.ne.s32.totalorder %s26, %s29
      %p38 = scmp.eq.s32.totalorder %s21, 1
      %p39 = por %p37, %p38
      %p40 = scmp.ne.s32.totalorder %s29, %s30
      %p41 = scmp.eq.s32.totalorder %s21, 0
      %p42 = por %p40, %p41
      %p43 = scmp.ne.s32.totalorder %s29, %s30
      %p44 = scmp.eq.s32.totalorder %s22, 1
      %p45 = por %p43, %p44
      %p47 = scmp.ne.s32.totalorder %s30, %s46
      %p48 = scmp.eq.s32.totalorder %s22, 0
      %p49 = por %p47, %p48
      %s51 = sadd.s32 %s50, 1
      %p54 = scmp.eq.s32.totalorder %s16, 1
      %p55 = scmp.ne.s32.totalorder %s50, %s52
      %p56 = scmp.eq.s32.totalorder %s16, 0
      %p57 = por %p55, %p56
      %p58 = scmp.ne.s32.totalorder %s50, %s52
      %p59 = scmp.eq.s32.totalorder %s21, 1
      %p60 = por %p58, %p59
      %p61 = scmp.ne.s32.totalorder %s52, %s53
      %p62 = scmp.eq.s32.totalorder %s21, 0
      %p63 = por %p61, %p62
      %p64 = scmp.ne.s32.totalorder %s52, %s53
      %p65 = scmp.eq.s32.totalorder %s22, 1
      %p66 = por %p64, %p65
      %p68 = scmp.ne.s32.totalorder %s53, %s67
      %p69 = scmp.eq.s32.totalorder %s22, 0
      %p70 = por %p68, %p69
      %s72 = sadd.s32 %s71, 1
      %p75 = scmp.eq.s32.totalorder %s16, 1
      %p76 = scmp.ne.s32.totalorder %s71, %s73
      %p77 = scmp.eq.s32.totalorder %s16, 0
      %p78 = por %p76, %p77
      %p79 = scmp.ne.s32.totalorder %s71, %s73
      %p80 = scmp.eq.s32.totalorder %s21, 1
      %p81 = por %p79, %p80
      %p82 = scmp.ne.s32.totalorder %s73, %s74
      %p83 = scmp.eq.s32.totalorder %s21, 0
      %p84 = por %p82, %p83
      %p85 = scmp.ne.s32.totalorder %s73, %s74
      %p86 = scmp.eq.s32.totalorder %s22, 1
      %p87 = por %p85, %p86
      %p89 = scmp.ne.s32.totalorder %s74, %s88
      %p90 = scmp.eq.s32.totalorder %s22, 0
      %p91 = por %p89, %p90
      %s92 = ssub.s32 %s16, %s23
      %p93 = scmp.eq.s32.totalorder %s92, 0
      %s95 = sadd.s32 %s94, 1
      %s96 = scalar_select %p93, %s94, %s95
      %p99 = pneg %p93
      %p100 = scmp.eq.s32.totalorder %s16, 1
      %p101 = por %p99, %p100
      %p102 = scmp.ne.s32.totalorder %s94, %s97
      %p103 = scmp.eq.s32.totalorder %s16, 0
      %p104 = por %p102, %p103
      %p105 = scmp.ne.s32.totalorder %s94, %s97
      %p106 = scmp.eq.s32.totalorder %s21, 1
      %p107 = por %p105, %p106
      %p108 = scmp.ne.s32.totalorder %s97, %s98
      %p109 = scmp.eq.s32.totalorder %s21, 0
      %p110 = por %p108, %p109
      %p111 = scmp.ne.s32.totalorder %s97, %s98
      %p112 = scmp.eq.s32.totalorder %s22, 1
      %p113 = por %p111, %p112
      %p115 = scmp.ne.s32.totalorder %s98, %s114
      %p116 = scmp.eq.s32.totalorder %s22, 0
      %p117 = por %p115, %p116
      %p118 = scmp.le.s32.totalorder 1, %s16
      %p119 = scmp.lt.s32.totalorder %s16, 3
      %p120 = pnand %p118, %p119
      %p121 = pneg %p120
      // Predicated region
      $region9: #{tpu_custom_call.1} parent=5 // pred_check
        _
      $region10: #{tpu_custom_call.1} parent=5 // pred_check_branch
        %123 = sbr.rel (%p120) target = $region12
      $region11: #{tpu_custom_call.1} parent=5 // pred_region
        %s124 = ssub.s32 %s16, 1
        // Predicated region
        $region13: #{tpu_custom_call.1} parent=11 // pred_check
          %p125 = pneg %p63
        $region14: #{tpu_custom_call.1} parent=11 // pred_check_branch
          %127 = sbr.rel (%p125) target = $region16
        $region15: #{tpu_custom_call.1} parent=11 // pred_region
          %129 = vsyncadd [#allocation6], 0
          %s130 = sshll.u32 %s1, 4
          %s131 = int_to_ptr.hbm [resolvable:$true] %s130
          %s132 = sshll.u32 [#allocation5], 4
          %s133 = int_to_ptr.vmem [resolvable:$true] %s132
          %138 = dma.hbm_to_vmem [thread:$0]  %s131, 512, %s133, [#allocation6], 128, 128, 8
        $region16: #{tpu_custom_call.1} parent=11 // pred_fallthru
          _
        // Predicated region
        $region17: #{tpu_custom_call.1} parent=11 // pred_check
          %p139 = pneg %p84
        $region18: #{tpu_custom_call.1} parent=11 // pred_check_branch
          %141 = sbr.rel (%p139) target = $region20
        $region19: #{tpu_custom_call.1} parent=11 // pred_region
          _
        $region20: #{tpu_custom_call.1} parent=11 // pred_fallthru
          _
      $region12: #{tpu_custom_call.1} parent=5 // pred_fallthru
        _
      %p142 = scmp.lt.s32.totalorder %s16, 2
      // Predicated region
      $region21: #{tpu_custom_call.1} parent=5 // pred_check
        %p143 = pneg %p142
      $region22: #{tpu_custom_call.1} parent=5 // pred_check_branch
        %145 = sbr.rel (%p143) target = $region24
      $region23: #{tpu_custom_call.1} parent=5 // pred_region
        // Predicated region
        $region25: #{tpu_custom_call.1} parent=23 // pred_check
          %p146 = pneg %p36
        $region26: #{tpu_custom_call.1} parent=23 // pred_check_branch
          %148 = sbr.rel (%p146) target = $region28
        $region27: #{tpu_custom_call.1} parent=23 // pred_region
          %s149 = sand.u32 %s26, 1
          %s150 = scalar_lea.sflag [#allocation3], %s149
          %s151 = sand.u32 %s26, 1
          %s152 = smul.addr %s151, 8
          %s153 = scalar_lea.vmem [#allocation2], %s152
          %155 = vsyncadd %s150, 0
          %s156 = smul.addr %s16, 8
          %s157 = scalar_lea.hbm %s0, %s156
          %s159 = sshll.u32 %s157, 4
          %s160 = int_to_ptr.hbm [resolvable:$true] %s159
          %s161 = sshll.u32 %s153, 4
          %s162 = int_to_ptr.vmem [resolvable:$true] %s161
          %164 = dma.hbm_to_vmem [thread:$0]  %s160, 128, %s162, %s150
        $region28: #{tpu_custom_call.1} parent=23 // pred_fallthru
          _
      $region24: #{tpu_custom_call.1} parent=5 // pred_fallthru
        _
      %p165 = scmp.le.s32.totalorder 1, %s16
      %p166 = scmp.lt.s32.totalorder %s16, 3
      %p167 = pnand %p165, %p166
      %p168 = pneg %p167
      // Predicated region
      $region29: #{tpu_custom_call.1} parent=5 // pred_check
        _
      $region30: #{tpu_custom_call.1} parent=5 // pred_check_branch
        %170 = sbr.rel (%p167) target = $region32
      $region31: #{tpu_custom_call.1} parent=5 // pred_region
        %s171 = ssub.s32 %s16, 1
        %s172 = sand.u32 %s29, 1
        %s173 = scalar_lea.sflag [#allocation3], %s172
        %s174 = sand.u32 %s29, 1
        %s175 = smul.addr %s174, 8
        %s176 = scalar_lea.vmem [#allocation2], %s175
        // Predicated region
        $region33: #{tpu_custom_call.1} parent=31 // pred_check
          %p177 = pneg %p42
        $region34: #{tpu_custom_call.1} parent=31 // pred_check_branch
          %179 = sbr.rel (%p177) target = $region36
        $region35: #{tpu_custom_call.1} parent=31 // pred_region
          %181 = dma.done %s173, 128
        $region36: #{tpu_custom_call.1} parent=31 // pred_fallthru
          _
        // Predicated region
        $region37: #{tpu_custom_call.1} parent=31 // pred_check
          %p182 = pneg %p63
        $region38: #{tpu_custom_call.1} parent=31 // pred_check_branch
          %184 = sbr.rel (%p182) target = $region40
        $region39: #{tpu_custom_call.1} parent=31 // pred_region
          %186 = dma.done [#allocation6], 512
        $region40: #{tpu_custom_call.1} parent=31 // pred_fallthru
          _
        %s187 = sand.u32 %s29, 1
        %s188 = scalar_lea.sflag [#allocation3], %s187
        %s189 = sand.u32 %s29, 1
        %s190 = smul.addr %s189, 8
        %s191 = scalar_lea.vmem [#allocation2], %s190
        %p192 = pneg %p42
        %p193 = pneg %p39
        %p194 = pneg %p63
        %p195 = pneg %p60
        %p196 = pneg %p84
        %p197 = pneg %p81
        %p198 = pneg %p110
        %p199 = pneg %p107
        %s200 = sand.u32 %s97, 1
        %s201 = scalar_lea.sflag [#allocation4], %s200
        %s202 = sand.u32 %s97, 1
        %s203 = smul.addr %s202, 8
        %s204 = scalar_lea.vmem [#allocation7], %s203
        %v205 = vld [vmem:[%s176] sm:$0xff]
        %v206 = vld [vmem:[#allocation5] sm:$0xff]
        %v207 = vld [vmem:[#allocation5 + $0x8] sm:$0xff]
        %v208 = vld [vmem:[#allocation5 + $0x10] sm:$0xff]
        %v209 = vld [vmem:[#allocation5 + $0x18] sm:$0xff]
        %vm210 = vcmask 261120
        %v212 = vsel %vm210, %v205, 0
        %214 = vmatpush.msra.mxu0 0.0
        %215 = vmatpush.msra.mxu0 0.0
        %216 = vmatpush.msra.mxu0 0.0
        %217 = vmatpush.msra.mxu0 0.0
        %218 = vmatpush.msra.mxu0 0.0
        %219 = vmatpush.msra.mxu0 0.0
        %220 = vmatpush.msra.mxu0 0.0
        %221 = vmatpush.msra.mxu0 0.0
        %222 = vmatpush.msra.mxu0 0.0
        %223 = vmatpush.msra.mxu0 0.0
        %224 = vmatpush.msra.mxu0 0.0
        %225 = vmatpush.msra.mxu0 0.0
        %226 = vmatpush.msra.mxu0 %v209
        %227 = vmatpush.msra.mxu0 %v208
        %228 = vmatpush.msra.mxu0 %v207
        %229 = vmatpush.msra.mxu0 %v206
        %230 = vmatmul.f32.gmra.mxu0 %v212
        %v231 = vpop.f32.mrf.mxu0
        %v232 = vadd.f32 0.0, %v231
        %233 = vdwg.mxu0
        %v234 = vld [vmem:[%s2] sm:$0x1]
        %v236 = vperm.slane %v234, 0
        %v238 = vsub.f32 %v232, %v236
        %239 = vst.msk [vmem:[%s204] sm:$0xff] %vm210, %v238
        %s240 = sand.u32 %s97, 1
        %s241 = scalar_lea.sflag [#allocation4], %s240
        %s242 = sand.u32 %s97, 1
        %s243 = smul.addr %s242, 8
        %s244 = scalar_lea.vmem [#allocation7], %s243
        // Predicated region
        $region41: #{tpu_custom_call.1} parent=31 // pred_check
          %p245 = pneg %p107
        $region42: #{tpu_custom_call.1} parent=31 // pred_check_branch
          %247 = sbr.rel (%p245) target = $region44
        $region43: #{tpu_custom_call.1} parent=31 // pred_region
          %249 = vsyncadd %s241, 0
          %s250 = smul.addr %s21, 8
          %s251 = scalar_lea.hbm %s3, %s250
          %s253 = sshll.u32 %s244, 4
          %s254 = int_to_ptr.vmem [resolvable:$true] %s253
          %s255 = sshll.u32 %s251, 4
          %s256 = int_to_ptr.hbm [resolvable:$true] %s255
          %258 = dma.vmem_to_hbm [thread:$0]  %s254, 128, %s256, %s241
        $region44: #{tpu_custom_call.1} parent=31 // pred_fallthru
          _
      $region32: #{tpu_custom_call.1} parent=5 // pred_fallthru
        _
      %p259 = scmp.le.s32.totalorder 2, %s16
      // Predicated region
      $region45: #{tpu_custom_call.1} parent=5 // pred_check
        %p260 = pneg %p259
      $region46: #{tpu_custom_call.1} parent=5 // pred_check_branch
        %262 = sbr.rel (%p260) target = $region48
      $region47: #{tpu_custom_call.1} parent=5 // pred_region
        %s263 = ssub.s32 %s16, 2
        // Predicated region
        $region49: #{tpu_custom_call.1} parent=47 // pred_check
          %p264 = pneg %p113
        $region50: #{tpu_custom_call.1} parent=47 // pred_check_branch
          %266 = sbr.rel (%p264) target = $region52
        $region51: #{tpu_custom_call.1} parent=47 // pred_region
          %s267 = sand.u32 %s98, 1
          %s268 = scalar_lea.sflag [#allocation4], %s267
          %s269 = sand.u32 %s98, 1
          %s270 = smul.addr %s269, 8
          %s271 = scalar_lea.vmem [#allocation7], %s270
          %273 = dma.done %s268, 128
        $region52: #{tpu_custom_call.1} parent=47 // pred_fallthru
          _
      $region48: #{tpu_custom_call.1} parent=5 // pred_fallthru
        _
    $region6: #{tpu_custom_call.1} parent=1 // loop_footer
      %s20 = sadd.s32 1, %s16
    $region7: #{tpu_custom_call.1} parent=1 // loop_footer_branch
      %15 = sbr.rel target = $region3
    $region8: #{tpu_custom_call.1} parent=1 // loop_exit
      _
    %274 = vsyncpa [#allocation3], 1
    %s275 = scalar_lea.sflag [#allocation3], 1
    %276 = vsyncpa %s275, 1
    %277 = vsyncpa [#allocation6], 1
    %278 = vsyncpa [#allocation4], 1
    %s279 = scalar_lea.sflag [#allocation4], 1
    %280 = vsyncpa %s279, 1

// kernel: tpu_custom_call.1
$region0: #{tpu_custom_call.1}
  #allocation0 [shape = 'u32[]', space=smem, size = 0x4, offset = 0x4, fixed_abs, tag = 'smem constant byte address 0x4 - core index']
  #allocation1 [shape = 'u32[72,128]{1,0:T(1,128)}', space=vmem, size = 0x9000, scoped, tag = 'internal scratch']
  %s0 = inlined_call_operand.hbm [shape: f32[16,32], index: 0, kind: input, shape index: {}]
  %s1 = inlined_call_operand.hbm [shape: f32[32,32], index: 1, kind: input, shape index: {}]
  %s2 = inlined_call_operand.vmem [shape: f32[1,32], index: 2, kind: input, shape index: {}]
  %s3 = inlined_call_operand.hbm [shape: f32[16,32], index: 3, kind: output, shape index: {}]
  %s4 = sld [smem:[#allocation0]]
  $region53: #{tpu_custom_call.1} parent=0
    _
  %s6 = ssub.s32 1, %s4
  %s7 = scalar_select 0, %s6, %s4
  $region1: #{tpu_custom_call.1} parent=0
    #allocation2 [shape = 'u8[8192]{0}', space=vmem, size = 0x2000, scoped, tag = 'input window, operand 0']
    #allocation3 [shape = 's32[2]{0}', space=sflag, size = 0x8, scoped, tag = 'scoped memory for tpu_custom_call.1']
    #allocation4 [shape = 's32[2]{0}', space=sflag, size = 0x8, scoped, tag = 'scoped memory for tpu_custom_call.1']
    #allocation5 [shape = 'u8[16384]{0}', space=vmem, size = 0x4000, scoped, tag = 'input window, operand 1, single buffered']
    #allocation6 [shape = 's32[1]{0}', space=sflag, size = 0x4, scoped, tag = 'scoped memory for tpu_custom_call.1']
    #allocation7 [shape = 'u8[8192]{0}', space=vmem, size = 0x2000, scoped, tag = 'output window, operand 0']
    %8 = vsyncpa [#allocation3], 0
    %s9 = scalar_lea.sflag [#allocation3], 1
    %10 = vsyncpa %s9, 0
    %11 = vsyncpa [#allocation6], 0
    %12 = vsyncpa [#allocation4], 0
    %s13 = scalar_lea.sflag [#allocation4], 1
    %14 = vsyncpa %s13, 0
    loop: start=0, step=1, limit=4
    $region2: #{tpu_custom_call.1} parent=1 // loop_pre_header
      _
    $region3: #{tpu_custom_call.1} parent=1 // loop_header
      %s16 = sphi 0, %s20
      %p17 = scmp.ge.s32.totalorder %s16, 4
      %s26 = sphi 0, %s28
      %s29 = sphi 0, %s26
      %s30 = sphi 0, %s29
      %s46 = sphi 0, %s30
      %s50 = sphi 0, %s50
      %s52 = sphi 0, %s50
      %s53 = sphi 0, %s52
      %s67 = sphi 0, %s53
      %s71 = sphi 0, %s71
      %s73 = sphi 0, %s71
      %s74 = sphi 0, %s73
      %s88 = sphi 0, %s74
      %s94 = sphi 0, %s96
      %s97 = sphi 0, %s94
      %s98 = sphi 0, %s97
      %s114 = sphi 0, %s98
    $region4: #{tpu_custom_call.1} parent=1 // loop_header_branch
      %19 = sbr.rel (%p17) target = $region8
    $region5: #{tpu_custom_call.1} parent=1 // loop_body
      %s21 = ssub.s32 %s16, 1
      %s22 = ssub.s32 %s16, 2
      %s23 = sadd.s32 %s16, 1
      %s24 = ssub.s32 %s16, %s23
      %p25 = scmp.eq.s32.totalorder %s24, 0
      %s27 = sadd.s32 %s26, 1
      %s28 = scalar_select %p25, %s26, %s27
      %p31 = pneg %p25
      %p32 = scmp.eq.s32.totalorder %s16, 1
      %p33 = por %p31, %p32
      %p34 = scmp.ne.s32.totalorder %s26, %s29
      %p35 = scmp.eq.s32.totalorder %s16, 0
      %p36 = por %p34, %p35
      %p37 = scmp.ne.s32.totalorder %s26, %s29
      %p38 = scmp.eq.s32.totalorder %s21, 1
      %p39 = por %p37, %p38
      %p40 = scmp.ne.s32.totalorder %s29, %s30
      %p41 = scmp.eq.s32.totalorder %s21, 0
      %p42 = por %p40, %p41
      %p43 = scmp.ne.s32.totalorder %s29, %s30
      %p44 = scmp.eq.s32.totalorder %s22, 1
      %p45 = por %p43, %p44
      %p47 = scmp.ne.s32.totalorder %s30, %s46
      %p48 = scmp.eq.s32.totalorder %s22, 0
      %p49 = por %p47, %p48
      %s51 = sadd.s32 %s50, 1
      %p54 = scmp.eq.s32.totalorder %s16, 1
      %p55 = scmp.ne.s32.totalorder %s50, %s52
      %p56 = scmp.eq.s32.totalorder %s16, 0
      %p57 = por %p55, %p56
      %p58 = scmp.ne.s32.totalorder %s50, %s52
      %p59 = scmp.eq.s32.totalorder %s21, 1
      %p60 = por %p58, %p59
      %p61 = scmp.ne.s32.totalorder %s52, %s53
      %p62 = scmp.eq.s32.totalorder %s21, 0
      %p63 = por %p61, %p62
      %p64 = scmp.ne.s32.totalorder %s52, %s53
      %p65 = scmp.eq.s32.totalorder %s22, 1
      %p66 = por %p64, %p65
      %p68 = scmp.ne.s32.totalorder %s53, %s67
      %p69 = scmp.eq.s32.totalorder %s22, 0
      %p70 = por %p68, %p69
      %s72 = sadd.s32 %s71, 1
      %p75 = scmp.eq.s32.totalorder %s16, 1
      %p76 = scmp.ne.s32.totalorder %s71, %s73
      %p77 = scmp.eq.s32.totalorder %s16, 0
      %p78 = por %p76, %p77
      %p79 = scmp.ne.s32.totalorder %s71, %s73
      %p80 = scmp.eq.s32.totalorder %s21, 1
      %p81 = por %p79, %p80
      %p82 = scmp.ne.s32.totalorder %s73, %s74
      %p83 = scmp.eq.s32.totalorder %s21, 0
      %p84 = por %p82, %p83
      %p85 = scmp.ne.s32.totalorder %s73, %s74
      %p86 = scmp.eq.s32.totalorder %s22, 1
      %p87 = por %p85, %p86
      %p89 = scmp.ne.s32.totalorder %s74, %s88
      %p90 = scmp.eq.s32.totalorder %s22, 0
      %p91 = por %p89, %p90
      %s92 = ssub.s32 %s16, %s23
      %p93 = scmp.eq.s32.totalorder %s92, 0
      %s95 = sadd.s32 %s94, 1
      %s96 = scalar_select %p93, %s94, %s95
      %p99 = pneg %p93
      %p100 = scmp.eq.s32.totalorder %s16, 1
      %p101 = por %p99, %p100
      %p102 = scmp.ne.s32.totalorder %s94, %s97
      %p103 = scmp.eq.s32.totalorder %s16, 0
      %p104 = por %p102, %p103
      %p105 = scmp.ne.s32.totalorder %s94, %s97
      %p106 = scmp.eq.s32.totalorder %s21, 1
      %p107 = por %p105, %p106
      %p108 = scmp.ne.s32.totalorder %s97, %s98
      %p109 = scmp.eq.s32.totalorder %s21, 0
      %p110 = por %p108, %p109
      %p111 = scmp.ne.s32.totalorder %s97, %s98
      %p112 = scmp.eq.s32.totalorder %s22, 1
      %p113 = por %p111, %p112
      %p115 = scmp.ne.s32.totalorder %s98, %s114
      %p116 = scmp.eq.s32.totalorder %s22, 0
      %p117 = por %p115, %p116
      %p118 = scmp.le.s32.totalorder 1, %s16
      %p119 = scmp.lt.s32.totalorder %s16, 3
      %p120 = pnand %p118, %p119
      %p121 = pneg %p120
      // Predicated region
      $region9: #{tpu_custom_call.1} parent=5 // pred_check
        _
      $region10: #{tpu_custom_call.1} parent=5 // pred_check_branch
        %123 = sbr.rel (%p120) target = $region12
      $region11: #{tpu_custom_call.1} parent=5 // pred_region
        %s124 = ssub.s32 %s16, 1
        // Predicated region
        $region13: #{tpu_custom_call.1} parent=11 // pred_check
          %p125 = pneg %p63
        $region14: #{tpu_custom_call.1} parent=11 // pred_check_branch
          %127 = sbr.rel (%p125) target = $region16
        $region15: #{tpu_custom_call.1} parent=11 // pred_region
          %129 = vsyncadd [#allocation6], 0
          %s130 = sshll.u32 %s1, 4
          %s131 = int_to_ptr.hbm [resolvable:$true] %s130
          %s132 = sshll.u32 [#allocation5], 4
          %s133 = int_to_ptr.vmem [resolvable:$true] %s132
          %138 = dma.hbm_to_vmem [thread:$0]  %s131, 512, %s133, [#allocation6], 128, 128, 8
        $region16: #{tpu_custom_call.1} parent=11 // pred_fallthru
          _
        // Predicated region
        $region17: #{tpu_custom_call.1} parent=11 // pred_check
          %p139 = pneg %p84
        $region18: #{tpu_custom_call.1} parent=11 // pred_check_branch
          %141 = sbr.rel (%p139) target = $region20
        $region19: #{tpu_custom_call.1} parent=11 // pred_region
          _
        $region20: #{tpu_custom_call.1} parent=11 // pred_fallthru
          _
      $region12: #{tpu_custom_call.1} parent=5 // pred_fallthru
        _
      %p142 = scmp.lt.s32.totalorder %s16, 2
      // Predicated region
      $region21: #{tpu_custom_call.1} parent=5 // pred_check
        %p143 = pneg %p142
      $region22: #{tpu_custom_call.1} parent=5 // pred_check_branch
        %145 = sbr.rel (%p143) target = $region24
      $region23: #{tpu_custom_call.1} parent=5 // pred_region
        // Predicated region
        $region25: #{tpu_custom_call.1} parent=23 // pred_check
          %p146 = pneg %p36
        $region26: #{tpu_custom_call.1} parent=23 // pred_check_branch
          %148 = sbr.rel (%p146) target = $region28
        $region27: #{tpu_custom_call.1} parent=23 // pred_region
          %s149 = sand.u32 %s26, 1
          %s150 = scalar_lea.sflag [#allocation3], %s149
          %s151 = sand.u32 %s26, 1
          %s152 = smul.addr %s151, 8
          %s153 = scalar_lea.vmem [#allocation2], %s152
          %155 = vsyncadd %s150, 0
          %s156 = smul.addr %s16, 8
          %s157 = scalar_lea.hbm %s0, %s156
          %s159 = sshll.u32 %s157, 4
          %s160 = int_to_ptr.hbm [resolvable:$true] %s159
          %s161 = sshll.u32 %s153, 4
          %s162 = int_to_ptr.vmem [resolvable:$true] %s161
          %164 = dma.hbm_to_vmem [thread:$0]  %s160, 128, %s162, %s150
        $region28: #{tpu_custom_call.1} parent=23 // pred_fallthru
          _
      $region24: #{tpu_custom_call.1} parent=5 // pred_fallthru
        _
      %p165 = scmp.le.s32.totalorder 1, %s16
      %p166 = scmp.lt.s32.totalorder %s16, 3
      %p167 = pnand %p165, %p166
      %p168 = pneg %p167
      // Predicated region
      $region29: #{tpu_custom_call.1} parent=5 // pred_check
        _
      $region30: #{tpu_custom_call.1} parent=5 // pred_check_branch
        %170 = sbr.rel (%p167) target = $region32
      $region31: #{tpu_custom_call.1} parent=5 // pred_region
        %s171 = ssub.s32 %s16, 1
        %s172 = sand.u32 %s29, 1
        %s173 = scalar_lea.sflag [#allocation3], %s172
        %s174 = sand.u32 %s29, 1
        %s175 = smul.addr %s174, 8
        %s176 = scalar_lea.vmem [#allocation2], %s175
        // Predicated region
        $region33: #{tpu_custom_call.1} parent=31 // pred_check
          %p177 = pneg %p42
        $region34: #{tpu_custom_call.1} parent=31 // pred_check_branch
          %179 = sbr.rel (%p177) target = $region36
        $region35: #{tpu_custom_call.1} parent=31 // pred_region
          %181 = dma.done %s173, 128
        $region36: #{tpu_custom_call.1} parent=31 // pred_fallthru
          _
        // Predicated region
        $region37: #{tpu_custom_call.1} parent=31 // pred_check
          %p182 = pneg %p63
        $region38: #{tpu_custom_call.1} parent=31 // pred_check_branch
          %184 = sbr.rel (%p182) target = $region40
        $region39: #{tpu_custom_call.1} parent=31 // pred_region
          %186 = dma.done [#allocation6], 512
        $region40: #{tpu_custom_call.1} parent=31 // pred_fallthru
          _
        %s187 = sand.u32 %s29, 1
        %s188 = scalar_lea.sflag [#allocation3], %s187
        %s189 = sand.u32 %s29, 1
        %s190 = smul.addr %s189, 8
        %s191 = scalar_lea.vmem [#allocation2], %s190
        %p192 = pneg %p42
        %p193 = pneg %p39
        %p194 = pneg %p63
        %p195 = pneg %p60
        %p196 = pneg %p84
        %p197 = pneg %p81
        %p198 = pneg %p110
        %p199 = pneg %p107
        %s200 = sand.u32 %s97, 1
        %s201 = scalar_lea.sflag [#allocation4], %s200
        %s202 = sand.u32 %s97, 1
        %s203 = smul.addr %s202, 8
        %s204 = scalar_lea.vmem [#allocation7], %s203
        %v205 = vld [vmem:[%s176] sm:$0xff]
        %v206 = vld [vmem:[#allocation5] sm:$0xff]
        %v207 = vld [vmem:[#allocation5 + $0x8] sm:$0xff]
        %v208 = vld [vmem:[#allocation5 + $0x10] sm:$0xff]
        %v209 = vld [vmem:[#allocation5 + $0x18] sm:$0xff]
        %vm210 = vcmask 261120
        %v212 = vsel %vm210, %v205, 0
        %214 = vmatpush.msra.mxu0 0.0
        %215 = vmatpush.msra.mxu0 0.0
        %216 = vmatpush.msra.mxu0 0.0
        %217 = vmatpush.msra.mxu0 0.0
        %218 = vmatpush.msra.mxu0 0.0
        %219 = vmatpush.msra.mxu0 0.0
        %220 = vmatpush.msra.mxu0 0.0
        %221 = vmatpush.msra.mxu0 0.0
        %222 = vmatpush.msra.mxu0 0.0
        %223 = vmatpush.msra.mxu0 0.0
        %224 = vmatpush.msra.mxu0 0.0
        %225 = vmatpush.msra.mxu0 0.0
        %226 = vmatpush.msra.mxu0 %v209
        %227 = vmatpush.msra.mxu0 %v208
        %228 = vmatpush.msra.mxu0 %v207
        %229 = vmatpush.msra.mxu0 %v206
        %230 = vmatmul.f32.gmra.mxu0 %v212
        %v231 = vpop.f32.mrf.mxu0
        %v232 = vadd.f32 0.0, %v231
        %233 = vdwg.mxu0
        %v234 = vld [vmem:[%s2] sm:$0x1]
        %v236 = vperm.slane %v234, 0
        %v238 = vsub.f32 %v232, %v236
        %239 = vst.msk [vmem:[%s204] sm:$0xff] %vm210, %v238
        %s240 = sand.u32 %s97, 1
        %s241 = scalar_lea.sflag [#allocation4], %s240
        %s242 = sand.u32 %s97, 1
        %s243 = smul.addr %s242, 8
        %s244 = scalar_lea.vmem [#allocation7], %s243
        // Predicated region
        $region41: #{tpu_custom_call.1} parent=31 // pred_check
          %p245 = pneg %p107
        $region42: #{tpu_custom_call.1} parent=31 // pred_check_branch
          %247 = sbr.rel (%p245) target = $region44
        $region43: #{tpu_custom_call.1} parent=31 // pred_region
          %249 = vsyncadd %s241, 0
          %s250 = smul.addr %s21, 8
          %s251 = scalar_lea.hbm %s3, %s250
          %s253 = sshll.u32 %s244, 4
          %s254 = int_to_ptr.vmem [resolvable:$true] %s253
          %s255 = sshll.u32 %s251, 4
          %s256 = int_to_ptr.hbm [resolvable:$true] %s255
          %258 = dma.vmem_to_hbm [thread:$0]  %s254, 128, %s256, %s241
        $region44: #{tpu_custom_call.1} parent=31 // pred_fallthru
          _
      $region32: #{tpu_custom_call.1} parent=5 // pred_fallthru
        _
      %p259 = scmp.le.s32.totalorder 2, %s16
      // Predicated region
      $region45: #{tpu_custom_call.1} parent=5 // pred_check
        %p260 = pneg %p259
      $region46: #{tpu_custom_call.1} parent=5 // pred_check_branch
        %262 = sbr.rel (%p260) target = $region48
      $region47: #{tpu_custom_call.1} parent=5 // pred_region
        %s263 = ssub.s32 %s16, 2
        // Predicated region
        $region49: #{tpu_custom_call.1} parent=47 // pred_check
          %p264 = pneg %p113
        $region50: #{tpu_custom_call.1} parent=47 // pred_check_branch
          %266 = sbr.rel (%p264) target = $region52
        $region51: #{tpu_custom_call.1} parent=47 // pred_region
          %s267 = sand.u32 %s98, 1
          %s268 = scalar_lea.sflag [#allocation4], %s267
          %s269 = sand.u32 %s98, 1
          %s270 = smul.addr %s269, 8
          %s271 = scalar_lea.vmem [#allocation7], %s270
          %273 = dma.done %s268, 128
        $region52: #{tpu_custom_call.1} parent=47 // pred_fallthru
          _
      $region48: #{tpu_custom_call.1} parent=5 // pred_fallthru
        _
    $region6: #{tpu_custom_call.1} parent=1 // loop_footer
      %s20 = sadd.s32 1, %s16
    $region7: #{tpu_custom_call.1} parent=1 // loop_footer_branch
      %15 = sbr.rel target = $region3
    $region8: #{tpu_custom_call.1} parent=1 // loop_exit
      _
    %274 = vsyncpa [#allocation3], 1
    %s275 = scalar_lea.sflag [#allocation3], 1
    %276 = vsyncpa %s275, 1
    %277 = vsyncpa [#allocation6], 1
    %278 = vsyncpa [#allocation4], 1
    %s279 = scalar_lea.sflag [#allocation4], 1
    %280 = vsyncpa %s279, 1

</llo_original>
